<compile_context>
chip_gen: v7x
topology: tpu7x:2x2x1
jax: 0.10.0
libtpu: 0.0.40
codegen_flags: <defaults>
</compile_context>

<pallas_src>
import jax
import jax.numpy as jnp
from jax import lax
from jax.experimental import pallas as pl
from jax.experimental.pallas import tpu as pltpu

LANE = 128  # TPU lane width


def critic_kernel(s_ref, a_ref, ws_ref, wa_ref, bw_ref, bo_ref, out_ref):
    cd = ws_ref.dtype
    # Input projection with batch on the lane axis: [H, tb], f32 accumulation.
    # Contract the feature axis of the untransposed activation block directly
    # (no wrapper-side transpose); cast to the MXU compute dtype in-kernel.
    dn = (((1,), (1,)), ((), ()))
    hT = lax.dot_general(ws_ref[...], s_ref[...].astype(cd), dn,
                         preferred_element_type=jnp.float32)
    hT = hT + lax.dot_general(wa_ref[...], a_ref[...].astype(cd), dn,
                              preferred_element_type=jnp.float32)
    # f32 epilogue: fused bias + ReLU on the VPU (lane broadcast of (H,1)).
    hT = jnp.maximum(hT + bw_ref[:, 0:1], 0.0)
    # Final 30 -> 1 projection: VPU multiply + cross-sublane (XLU) reduce;
    # lane-dense (1, tb) store; scalar output bias from SMEM.
    out_ref[...] = (jnp.sum(hT * bw_ref[:, 1:2], axis=0, keepdims=True)
                    + bo_ref[0])


def prepare_params(params, compute_dtype=jnp.bfloat16):
    """One-time parameter transform (PyTorch [out, in] layout in)."""
    ws, bs, wa, ba, wo, bo = params
    ws_c = ws.astype(compute_dtype)                                  # [30, s_dim]
    wa_c = wa.astype(compute_dtype)                                  # [30, a_dim]
    bw = jnp.stack([(bs + ba).astype(jnp.float32),                   # fused bias
                    wo.reshape(-1).astype(jnp.float32)], axis=1)     # [30, 2]
    bo_s = bo.reshape(1).astype(jnp.float32)                         # [1] (SMEM)
    return ws_c, wa_c, bw, bo_s


def critic_net_forward(s, a, prepared, *, block_b=1024):
    """s: [B, s_dim], a: [B, a_dim] -> value: [B, 1] float32."""
    ws, wa, bw, bo = prepared
    B, SD = s.shape
    AD = a.shape[1]
    H = ws.shape[0]
    F = SD + AD

    # Batch tile: multiple of 128 lanes.
    block_b = max(LANE, -(-block_b // LANE) * LANE)
    b_ceil = -(-B // LANE) * LANE
    tb = min(block_b, b_ceil)
    # Keep >= 2 grid blocks when the batch allows it so v7x's two TensorCores
    # can both take steps (no effect on v5e/v6e besides one cheap extra step).
    if tb >= b_ceil and b_ceil >= 2 * LANE:
        tb = -(-(b_ceil // 2) // LANE) * LANE
    n_blocks = pl.cdiv(B, tb)

    cost = pl.CostEstimate(
        flops=2 * B * H * (F + 1),
        transcendentals=0,
        bytes_accessed=(B * F * s.dtype.itemsize            # activations
                        + B * 4                              # output row
                        + ws.size * ws.dtype.itemsize
                        + wa.size * wa.dtype.itemsize
                        + bw.size * 4 + 4),
    )

    out = pl.pallas_call(
        critic_kernel,
        out_shape=jax.ShapeDtypeStruct((1, B), jnp.float32),
        grid=(n_blocks,),
        in_specs=[
            pl.BlockSpec((tb, SD), lambda i: (i, 0)),   # s: tiled over batch
            pl.BlockSpec((tb, AD), lambda i: (i, 0)),   # a: tiled over batch
            pl.BlockSpec((H, SD), lambda i: (0, 0)),    # Ws: resident
            pl.BlockSpec((H, AD), lambda i: (0, 0)),    # Wa: resident
            pl.BlockSpec((H, 2), lambda i: (0, 0)),     # [fused bias | wo]: resident
            pl.BlockSpec(memory_space=pltpu.MemorySpace.SMEM),  # bo scalar
        ],
        out_specs=pl.BlockSpec((1, tb), lambda i: (0, i)),
        compiler_params=pltpu.CompilerParams(
            dimension_semantics=("parallel",)),
        cost_estimate=cost,
    )(s, a, ws, wa, bw, bo)

    # Back to the PyTorch [B, 1] layout (pure layout plumbing).
    return out[0].reshape(B, 1)


def init_params(key, s_dim, a_dim, hidden=30):
    """PyTorch-layout params: weights [out, in], weight ~ N(0, 0.1),
    bias ~ U(-1/sqrt(fan_in), 1/sqrt(fan_in)) (nn.Linear default)."""
    k = jax.random.split(key, 6)
    ws = 0.1 * jax.random.normal(k[0], (hidden, s_dim), jnp.float32)
    wa = 0.1 * jax.random.normal(k[1], (hidden, a_dim), jnp.float32)
    wo = 0.1 * jax.random.normal(k[2], (1, hidden), jnp.float32)
    bs = jax.random.uniform(k[3], (hidden,), jnp.float32,
                            -1.0 / jnp.sqrt(s_dim), 1.0 / jnp.sqrt(s_dim))
    ba = jax.random.uniform(k[4], (hidden,), jnp.float32,
                            -1.0 / jnp.sqrt(a_dim), 1.0 / jnp.sqrt(a_dim))
    bo = jax.random.uniform(k[5], (1,), jnp.float32,
                            -1.0 / jnp.sqrt(hidden), 1.0 / jnp.sqrt(hidden))
    return ws, bs, wa, ba, wo, bo


def reference_forward(s, a, params):
    ws, bs, wa, ba, wo, bo = params
    hi = jax.lax.Precision.HIGHEST
    x = jnp.dot(s, ws.T, precision=hi) + bs
    y = jnp.dot(a, wa.T, precision=hi) + ba
    return jnp.dot(jnp.maximum(x + y, 0.0), wo.T, precision=hi) + bo


if __name__ == "__main__":
    key = jax.random.PRNGKey(0)
    s_dim, a_dim, batch = 16, 4, 8

    k_s, k_a, k_p, k_bs, k_ba = jax.random.split(key, 5)
    s = jax.random.normal(k_s, (batch, s_dim), jnp.float32)
    a = jax.random.normal(k_a, (batch, a_dim), jnp.float32)
    params = init_params(k_p, s_dim, a_dim)
    ref = reference_forward(s, a, params)

    # 1) Exact f32 path (tight check against the PyTorch-equivalent reference).
    prep_f32 = prepare_params(params, compute_dtype=jnp.float32)
    v32 = jax.block_until_ready(critic_net_forward(s, a, prep_f32))
    assert v32.shape == (batch, 1)
    assert jnp.allclose(v32, ref, atol=1e-4, rtol=1e-4)

    # 2) bf16 MXU-operand path (cast happens inside the kernel).
    prep_bf16 = prepare_params(params, compute_dtype=jnp.bfloat16)
    v16 = jax.block_until_ready(critic_net_forward(s, a, prep_bf16))
    assert v16.shape == (batch, 1)
    assert jnp.allclose(v16, ref, atol=3e-2, rtol=3e-2)

    # 3) Multi-block grid with a non-lane-aligned batch: exercises the
    #    masked trailing partial block and the >=2-block (v7x) path.
    big_b = 300
    sb = jax.random.normal(k_bs, (big_b, s_dim), jnp.float32)
    ab = jax.random.normal(k_ba, (big_b, a_dim), jnp.float32)
    vb = jax.block_until_ready(
        critic_net_forward(sb, ab, prep_bf16, block_b=1024))
    refb = reference_forward(sb, ab, params)
    assert vb.shape == (big_b, 1)
    assert jnp.allclose(vb, refb, atol=3e-2, rtol=3e-2)

    print("KERNEL_OK")
</pallas_src>

<mosaic_0001>
module attributes {stable_mosaic.version = 11 : i64} {
  func.func @critic_kernel(%arg0: i32, %arg1: memref<128x16xf32, #tpu.memory_space<vmem>>, %arg2: memref<128x4xf32, #tpu.memory_space<vmem>>, %arg3: memref<30x16xf32, #tpu.memory_space<vmem>>, %arg4: memref<30x4xf32, #tpu.memory_space<vmem>>, %arg5: memref<30x2xf32, #tpu.memory_space<vmem>>, %arg6: memref<1xf32, #tpu.memory_space<smem>>, %arg7: memref<1x128xf32, #tpu.memory_space<vmem>>) attributes {dimension_semantics = [#tpu.dimension_semantics<parallel>], iteration_bounds = array<i64: 1>, scalar_prefetch = 0 : i64, scratch_operands = 0 : i64, tpu.core_type = #tpu.core_type<tc>, window_params = [{transform_indices = @transform_0, window_bounds = array<i64: 128, 16>}, {transform_indices = @transform_1, window_bounds = array<i64: 128, 4>}, {pipeline_mode = #tpu.pipeline_mode<synchronous>, transform_indices = @transform_2, window_bounds = array<i64: 30, 16>}, {pipeline_mode = #tpu.pipeline_mode<synchronous>, transform_indices = @transform_3, window_bounds = array<i64: 30, 4>}, {pipeline_mode = #tpu.pipeline_mode<synchronous>, transform_indices = @transform_4, window_bounds = array<i64: 30, 2>}, {transform_indices = @transform_5, window_bounds = array<i64: 1>}, {transform_indices = @transform_6, window_bounds = array<i64: 1, 128>}]} {
    %c0 = arith.constant 0 : index
    %c0_0 = arith.constant 0 : index
    %0 = vector.load %arg3[%c0, %c0_0] : memref<30x16xf32, #tpu.memory_space<vmem>>, vector<30x16xf32>
    %c0_1 = arith.constant 0 : index
    %c0_2 = arith.constant 0 : index
    %1 = vector.load %arg1[%c0_1, %c0_2] : memref<128x16xf32, #tpu.memory_space<vmem>>, vector<128x16xf32>
    %cst = arith.constant dense<0.000000e+00> : vector<30x128xf32>
    %2 = tpu.matmul %0, %1, %cst {dimension_numbers = #tpu.dot_dimension_numbers<[1], [1], [0], [0], [0, 0, 1, 0], [], []>} : vector<30x16xf32>, vector<128x16xf32>, vector<30x128xf32> -> vector<30x128xf32>
    %c0_3 = arith.constant 0 : index
    %c0_4 = arith.constant 0 : index
    %3 = vector.load %arg4[%c0_3, %c0_4] : memref<30x4xf32, #tpu.memory_space<vmem>>, vector<30x4xf32>
    %c0_5 = arith.constant 0 : index
    %c0_6 = arith.constant 0 : index
    %4 = vector.load %arg2[%c0_5, %c0_6] : memref<128x4xf32, #tpu.memory_space<vmem>>, vector<128x4xf32>
    %cst_7 = arith.constant dense<0.000000e+00> : vector<30x128xf32>
    %5 = tpu.matmul %3, %4, %cst_7 {dimension_numbers = #tpu.dot_dimension_numbers<[1], [1], [0], [0], [0, 0, 1, 0], [], []>} : vector<30x4xf32>, vector<128x4xf32>, vector<30x128xf32> -> vector<30x128xf32>
    %6 = arith.addf %2, %5 : vector<30x128xf32>
    %c0_8 = arith.constant 0 : index
    %c0_9 = arith.constant 0 : index
    %7 = vector.load %arg5[%c0_8, %c0_9] : memref<30x2xf32, #tpu.memory_space<vmem>>, vector<30x1xf32>
    %8 = vector.broadcast %7 : vector<30x1xf32> to vector<30x128xf32>
    %9 = arith.addf %6, %8 : vector<30x128xf32>
    %cst_10 = arith.constant 0.000000e+00 : f32
    %10 = vector.broadcast %cst_10 : f32 to vector<30x128xf32>
    %11 = arith.maximumf %9, %10 : vector<30x128xf32>
    %c0_11 = arith.constant 0 : index
    %c1 = arith.constant 1 : index
    %12 = vector.load %arg5[%c0_11, %c1] : memref<30x2xf32, #tpu.memory_space<vmem>>, vector<30x1xf32>
    %13 = vector.broadcast %12 : vector<30x1xf32> to vector<30x128xf32>
    %14 = arith.mulf %11, %13 : vector<30x128xf32>
    %cst_12 = arith.constant dense<0.000000e+00> : vector<128xf32>
    %15 = vector.multi_reduction <add>, %14, %cst_12 [0] : vector<30x128xf32> to vector<128xf32>
    %16 = vector.shape_cast %15 : vector<128xf32> to vector<1x128xf32>
    %c0_13 = arith.constant 0 : index
    %17 = memref.load %arg6[%c0_13] : memref<1xf32, #tpu.memory_space<smem>>
    %18 = vector.broadcast %17 : f32 to vector<1x128xf32>
    %19 = arith.addf %16, %18 : vector<1x128xf32>
    %c0_14 = arith.constant 0 : index
    %c0_15 = arith.constant 0 : index
    %20 = vector.load %arg7[%c0_14, %c0_15] : memref<1x128xf32, #tpu.memory_space<vmem>>, vector<1x128xf32>
    tpu.vector_store %arg7[%c0_14, %c0_15], %19 {strides = array<i32>} : memref<1x128xf32, #tpu.memory_space<vmem>>, vector<1x128xf32>,
    return
  }
  func.func @transform_0(%arg0: i32) -> (i32, i32) {
    %c0_i32 = arith.constant 0 : i32
    %c0_i32_0 = arith.constant 0 : i32
    return %arg0, %c0_i32 : i32, i32
  }
  func.func @transform_1(%arg0: i32) -> (i32, i32) {
    %c0_i32 = arith.constant 0 : i32
    %c0_i32_0 = arith.constant 0 : i32
    return %arg0, %c0_i32 : i32, i32
  }
  func.func @transform_2(%arg0: i32) -> (i32, i32) {
    %c0_i32 = arith.constant 0 : i32
    %c0_i32_0 = arith.constant 0 : i32
    %c0_i32_1 = arith.constant 0 : i32
    return %c0_i32, %c0_i32_0 : i32, i32
  }
  func.func @transform_3(%arg0: i32) -> (i32, i32) {
    %c0_i32 = arith.constant 0 : i32
    %c0_i32_0 = arith.constant 0 : i32
    %c0_i32_1 = arith.constant 0 : i32
    return %c0_i32, %c0_i32_0 : i32, i32
  }
  func.func @transform_4(%arg0: i32) -> (i32, i32) {
    %c0_i32 = arith.constant 0 : i32
    %c0_i32_0 = arith.constant 0 : i32
    %c0_i32_1 = arith.constant 0 : i32
    return %c0_i32, %c0_i32_0 : i32, i32
  }
  func.func @transform_5(%arg0: i32) -> i32 {
    %c0_i32 = arith.constant 0 : i32
    %c0_i32_0 = arith.constant 0 : i32
    return %c0_i32 : i32
  }
  func.func @transform_6(%arg0: i32) -> (i32, i32) {
    %c0_i32 = arith.constant 0 : i32
    %c0_i32_0 = arith.constant 0 : i32
    return %c0_i32, %arg0 : i32, i32
  }
}

</mosaic_0001>

<llo_original>
// kernel: tpu_custom_call.1
$region0: #{tpu_custom_call.1}
  #allocation0 [shape = 'u32[]', space=smem, size = 0x4, offset = 0x4, fixed_abs, tag = 'smem constant byte address 0x4 - core index']
  #allocation1 [shape = 'u32[144,128]{1,0:T(1,128)}', space=vmem, size = 0x12000, scoped, tag = 'internal scratch']
  #allocation2 [shape = 'f32[1]{0:T(128)S(6)}', space=smem, size = 0x200, scoped, tag = 'scoped memory for tpu_custom_call.1']
  %s0 = inlined_call_operand.vmem [shape: f32[8,16], index: 0, kind: input, shape index: {}]
  %s1 = inlined_call_operand.vmem [shape: f32[8,4], index: 1, kind: input, shape index: {}]
  %s2 = inlined_call_operand.vmem [shape: f32[30,16], index: 2, kind: input, shape index: {}]
  %s3 = inlined_call_operand.vmem [shape: f32[30,4], index: 3, kind: input, shape index: {}]
  %s4 = inlined_call_operand.vmem [shape: f32[30,2], index: 4, kind: input, shape index: {}]
  %s5 = inlined_call_operand.<no memory space> [shape: f32[1], index: 5, kind: input, shape index: {}]
  %s6 = inlined_call_operand.hbm [shape: f32[1,8], index: 6, kind: output, shape index: {}]
  %s7 = sld [smem:[#allocation0]]
  $region34: #{tpu_custom_call.1} parent=0
    _
  %s9 = ssub.s32 1, %s7
  %s10 = scalar_select 0, %s9, %s7
  %11 = sst [smem:[#allocation2]] %s5
  $region1: #{tpu_custom_call.1} parent=0
    #allocation3 [shape = 'u8[512]{0}', space=vmem, size = 0x400, scoped, tag = 'output window, operand 0, single buffered']
    #allocation4 [shape = 's32[1]{0}', space=sflag, size = 0x4, scoped, tag = 'scoped memory for tpu_custom_call.1']
    %12 = vsyncpa [#allocation4], 0
    // Predicated region
    $region2: #{tpu_custom_call.1} parent=1 // pred_check
      _
    $region3: #{tpu_custom_call.1} parent=1 // pred_check_branch
      %14 = sbr.rel (0) target = $region5
    $region4: #{tpu_custom_call.1} parent=1 // pred_region
      _
    $region5: #{tpu_custom_call.1} parent=1 // pred_fallthru
      _
    // Predicated region
    $region6: #{tpu_custom_call.1} parent=1 // pred_check
      _
    $region7: #{tpu_custom_call.1} parent=1 // pred_check_branch
      %16 = sbr.rel (0) target = $region9
    $region8: #{tpu_custom_call.1} parent=1 // pred_region
      _
    $region9: #{tpu_custom_call.1} parent=1 // pred_fallthru
      _
    // Predicated region
    $region10: #{tpu_custom_call.1} parent=1 // pred_check
      _
    $region11: #{tpu_custom_call.1} parent=1 // pred_check_branch
      %18 = sbr.rel (0) target = $region13
    $region12: #{tpu_custom_call.1} parent=1 // pred_region
      _
    $region13: #{tpu_custom_call.1} parent=1 // pred_fallthru
      _
    // Predicated region
    $region14: #{tpu_custom_call.1} parent=1 // pred_check
      _
    $region15: #{tpu_custom_call.1} parent=1 // pred_check_branch
      %20 = sbr.rel (0) target = $region17
    $region16: #{tpu_custom_call.1} parent=1 // pred_region
      _
    $region17: #{tpu_custom_call.1} parent=1 // pred_fallthru
      _
    // Predicated region
    $region18: #{tpu_custom_call.1} parent=1 // pred_check
      _
    $region19: #{tpu_custom_call.1} parent=1 // pred_check_branch
      %22 = sbr.rel (0) target = $region21
    $region20: #{tpu_custom_call.1} parent=1 // pred_region
      _
    $region21: #{tpu_custom_call.1} parent=1 // pred_fallthru
      _
    // Predicated region
    $region22: #{tpu_custom_call.1} parent=1 // pred_check
      _
    $region23: #{tpu_custom_call.1} parent=1 // pred_check_branch
      %24 = sbr.rel (0) target = $region25
    $region24: #{tpu_custom_call.1} parent=1 // pred_region
      _
    $region25: #{tpu_custom_call.1} parent=1 // pred_fallthru
      _
    %v25 = vld [vmem:[%s2] sm:$0xff]
    %v26 = vld [vmem:[%s2 + $0x8] sm:$0xff]
    %v27 = vld [vmem:[%s2 + $0x10] sm:$0xff]
    %v28 = vld [vmem:[%s2 + $0x18] sm:$0x3f]
    %v29 = vld [vmem:[%s0] sm:$0xff]
    %v30 = vld [vmem:[%s0 + $0x8] sm:$0xff]
    %v31 = vld [vmem:[%s0 + $0x10] sm:$0xff]
    %v32 = vld [vmem:[%s0 + $0x18] sm:$0xff]
    %v33 = vld [vmem:[%s0 + $0x20] sm:$0xff]
    %v34 = vld [vmem:[%s0 + $0x28] sm:$0xff]
    %v35 = vld [vmem:[%s0 + $0x30] sm:$0xff]
    %v36 = vld [vmem:[%s0 + $0x38] sm:$0xff]
    %v37 = vld [vmem:[%s0 + $0x40] sm:$0xff]
    %v38 = vld [vmem:[%s0 + $0x48] sm:$0xff]
    %v39 = vld [vmem:[%s0 + $0x50] sm:$0xff]
    %v40 = vld [vmem:[%s0 + $0x58] sm:$0xff]
    %v41 = vld [vmem:[%s0 + $0x60] sm:$0xff]
    %v42 = vld [vmem:[%s0 + $0x68] sm:$0xff]
    %v43 = vld [vmem:[%s0 + $0x70] sm:$0xff]
    %v44 = vld [vmem:[%s0 + $0x78] sm:$0xff]
    %v45 = vld [vmem:[%s3] sm:$0xff]
    %v46 = vld [vmem:[%s3 + $0x8] sm:$0xff]
    %v47 = vld [vmem:[%s3 + $0x10] sm:$0xff]
    %v48 = vld [vmem:[%s3 + $0x18] sm:$0x3f]
    %v49 = vld [vmem:[%s1] sm:$0xff]
    %v50 = vld [vmem:[%s1 + $0x8] sm:$0xff]
    %v51 = vld [vmem:[%s1 + $0x10] sm:$0xff]
    %v52 = vld [vmem:[%s1 + $0x18] sm:$0xff]
    %v53 = vld [vmem:[%s1 + $0x20] sm:$0xff]
    %v54 = vld [vmem:[%s1 + $0x28] sm:$0xff]
    %v55 = vld [vmem:[%s1 + $0x30] sm:$0xff]
    %v56 = vld [vmem:[%s1 + $0x38] sm:$0xff]
    %v57 = vld [vmem:[%s1 + $0x40] sm:$0xff]
    %v58 = vld [vmem:[%s1 + $0x48] sm:$0xff]
    %v59 = vld [vmem:[%s1 + $0x50] sm:$0xff]
    %v60 = vld [vmem:[%s1 + $0x58] sm:$0xff]
    %v61 = vld [vmem:[%s1 + $0x60] sm:$0xff]
    %v62 = vld [vmem:[%s1 + $0x68] sm:$0xff]
    %v63 = vld [vmem:[%s1 + $0x70] sm:$0xff]
    %v64 = vld [vmem:[%s1 + $0x78] sm:$0xff]
    %vm65 = vcmask 31744
    %v67 = vsel %vm65, %v45, 0
    %v70 = vsel %vm65, %v46, 0
    %v73 = vsel %vm65, %v47, 0
    %v76 = vsel %vm65, %v48, 0
    %v79 = vsel %vm65, %v49, 0
    %v82 = vsel %vm65, %v50, 0
    %v85 = vsel %vm65, %v51, 0
    %v88 = vsel %vm65, %v52, 0
    %v91 = vsel %vm65, %v53, 0
    %v94 = vsel %vm65, %v54, 0
    %v97 = vsel %vm65, %v55, 0
    %v100 = vsel %vm65, %v56, 0
    %v103 = vsel %vm65, %v57, 0
    %v106 = vsel %vm65, %v58, 0
    %v109 = vsel %vm65, %v59, 0
    %v112 = vsel %vm65, %v60, 0
    %v115 = vsel %vm65, %v61, 0
    %v118 = vsel %vm65, %v62, 0
    %v121 = vsel %vm65, %v63, 0
    %v124 = vsel %vm65, %v64, 0
    %126 = vmatprep.subr.mxu0 0.0
    %127 = vmatpush1.xpose.msra.mxu0 %v79
    %128 = vmatprep.subr.mxu0 0.0
    %129 = vmatpush1.xpose.msra.mxu0 %v82
    %130 = vmatprep.subr.mxu0 0.0
    %131 = vmatpush1.xpose.msra.mxu0 %v85
    %132 = vmatprep.subr.mxu0 0.0
    %133 = vmatpush1.xpose.msra.mxu0 %v88
    %134 = vmatprep.subr.mxu0 0.0
    %135 = vmatpush1.xpose.msra.mxu0 %v91
    %136 = vmatprep.subr.mxu0 0.0
    %137 = vmatpush1.xpose.msra.mxu0 %v94
    %138 = vmatprep.subr.mxu0 0.0
    %139 = vmatpush1.xpose.msra.mxu0 %v97
    %140 = vmatprep.subr.mxu0 0.0
    %141 = vmatpush1.xpose.msra.mxu0 %v100
    %142 = vmatprep.subr.mxu0 0.0
    %143 = vmatpush1.xpose.msra.mxu0 %v103
    %144 = vmatprep.subr.mxu0 0.0
    %145 = vmatpush1.xpose.msra.mxu0 %v106
    %146 = vmatprep.subr.mxu0 0.0
    %147 = vmatpush1.xpose.msra.mxu0 %v109
    %148 = vmatprep.subr.mxu0 0.0
    %149 = vmatpush1.xpose.msra.mxu0 %v112
    %150 = vmatprep.subr.mxu0 0.0
    %151 = vmatpush1.xpose.msra.mxu0 %v115
    %152 = vmatprep.subr.mxu0 0.0
    %153 = vmatpush1.xpose.msra.mxu0 %v118
    %154 = vmatprep.subr.mxu0 0.0
    %155 = vmatpush1.xpose.msra.mxu0 %v121
    %156 = vmatprep.subr.mxu0 0.0
    %157 = vmatpush1.xpose.msra.mxu0 %v124
    %158 = vmatprep.subr.mxu0 0.0
    %159 = vmatpush1.xpose.msra.mxu0 0.0
    %160 = vmatprep.subr.mxu0 0.0
    %161 = vmatpush1.xpose.msra.mxu0 0.0
    %162 = vmatprep.subr.mxu0 0.0
    %163 = vmatpush1.xpose.msra.mxu0 0.0
    %164 = vmatprep.subr.mxu0 0.0
    %165 = vmatpush1.xpose.msra.mxu0 0.0
    %166 = vmatprep.subr.mxu0 0.0
    %167 = vmatpush1.xpose.msra.mxu0 0.0
    %168 = vmatprep.subr.mxu0 0.0
    %169 = vmatpush1.xpose.msra.mxu0 0.0
    %170 = vmatprep.subr.mxu0 0.0
    %171 = vmatpush1.xpose.msra.mxu0 0.0
    %172 = vmatprep.subr.mxu0 0.0
    %173 = vmatpush1.xpose.msra.mxu0 0.0
    %174 = vmatprep.subr.mxu0 0.0
    %175 = vmatpush1.xpose.msra.mxu0 0.0
    %176 = vmatprep.subr.mxu0 0.0
    %177 = vmatpush1.xpose.msra.mxu0 0.0
    %178 = vmatprep.subr.mxu0 0.0
    %179 = vmatpush1.xpose.msra.mxu0 0.0
    %180 = vmatprep.subr.mxu0 0.0
    %181 = vmatpush1.xpose.msra.mxu0 0.0
    %182 = vmatprep.subr.mxu0 0.0
    %183 = vmatpush1.xpose.msra.mxu0 0.0
    %184 = vmatprep.subr.mxu0 0.0
    %185 = vmatpush1.xpose.msra.mxu0 0.0
    %186 = vmatprep.subr.mxu0 0.0
    %187 = vmatpush1.xpose.msra.mxu0 0.0
    %188 = vmatprep.subr.mxu0 0.0
    %189 = vmatpush1.xpose.msra.mxu0 0.0
    %190 = vmatprep.mubr.f32.mxu0 0.0
    %191 = vmatmul.mubr.f32.gmra.mrb[0].mxu0 %v67
    %v192 = vpop.f32.mrb[0].mxu0
    %v193 = vadd.f32 0.0, %v192
    %v194 = vpop.f32.mrb[0].mxu0
    %195 = vmatprep.mubr.f32.mxu0 0.0
    %196 = vmatmul.mubr.f32.gmra.mrb[0].mxu0 %v70
    %v197 = vpop.f32.mrb[0].mxu0
    %v198 = vadd.f32 0.0, %v197
    %v199 = vpop.f32.mrb[0].mxu0
    %200 = vmatprep.mubr.f32.mxu0 0.0
    %201 = vmatmul.mubr.f32.gmra.mrb[0].mxu0 %v73
    %v202 = vpop.f32.mrb[0].mxu0
    %v203 = vadd.f32 0.0, %v202
    %v204 = vpop.f32.mrb[0].mxu0
    %205 = vmatprep.mubr.f32.mxu0 0.0
    %206 = vmatmul.mubr.f32.gmra.mrb[0].mxu0 %v76
    %v207 = vpop.f32.mrb[0].mxu0
    %v208 = vadd.f32 0.0, %v207
    %v209 = vpop.f32.mrb[0].mxu0
    %210 = vdwg.mxu0
    %vm211 = vcmask 130048
    %v213 = vsel %vm211, %v25, 0
    %v216 = vsel %vm211, %v26, 0
    %v219 = vsel %vm211, %v27, 0
    %v222 = vsel %vm211, %v28, 0
    %v225 = vsel %vm211, %v29, 0
    %v228 = vsel %vm211, %v30, 0
    %v231 = vsel %vm211, %v31, 0
    %v234 = vsel %vm211, %v32, 0
    %v237 = vsel %vm211, %v33, 0
    %v240 = vsel %vm211, %v34, 0
    %v243 = vsel %vm211, %v35, 0
    %v246 = vsel %vm211, %v36, 0
    %v249 = vsel %vm211, %v37, 0
    %v252 = vsel %vm211, %v38, 0
    %v255 = vsel %vm211, %v39, 0
    %v258 = vsel %vm211, %v40, 0
    %v261 = vsel %vm211, %v41, 0
    %v264 = vsel %vm211, %v42, 0
    %v267 = vsel %vm211, %v43, 0
    %v270 = vsel %vm211, %v44, 0
    %272 = vmatprep.subr.mxu0 0.0
    %273 = vmatpush1.xpose.msra.mxu0 %v225
    %274 = vmatprep.subr.mxu0 0.0
    %275 = vmatpush1.xpose.msra.mxu0 %v228
    %276 = vmatprep.subr.mxu0 0.0
    %277 = vmatpush1.xpose.msra.mxu0 %v231
    %278 = vmatprep.subr.mxu0 0.0
    %279 = vmatpush1.xpose.msra.mxu0 %v234
    %280 = vmatprep.subr.mxu0 0.0
    %281 = vmatpush1.xpose.msra.mxu0 %v237
    %282 = vmatprep.subr.mxu0 0.0
    %283 = vmatpush1.xpose.msra.mxu0 %v240
    %284 = vmatprep.subr.mxu0 0.0
    %285 = vmatpush1.xpose.msra.mxu0 %v243
    %286 = vmatprep.subr.mxu0 0.0
    %287 = vmatpush1.xpose.msra.mxu0 %v246
    %288 = vmatprep.subr.mxu0 0.0
    %289 = vmatpush1.xpose.msra.mxu0 %v249
    %290 = vmatprep.subr.mxu0 0.0
    %291 = vmatpush1.xpose.msra.mxu0 %v252
    %292 = vmatprep.subr.mxu0 0.0
    %293 = vmatpush1.xpose.msra.mxu0 %v255
    %294 = vmatprep.subr.mxu0 0.0
    %295 = vmatpush1.xpose.msra.mxu0 %v258
    %296 = vmatprep.subr.mxu0 0.0
    %297 = vmatpush1.xpose.msra.mxu0 %v261
    %298 = vmatprep.subr.mxu0 0.0
    %299 = vmatpush1.xpose.msra.mxu0 %v264
    %300 = vmatprep.subr.mxu0 0.0
    %301 = vmatpush1.xpose.msra.mxu0 %v267
    %302 = vmatprep.subr.mxu0 0.0
    %303 = vmatpush1.xpose.msra.mxu0 %v270
    %304 = vmatprep.subr.mxu0 0.0
    %305 = vmatpush1.xpose.msra.mxu0 0.0
    %306 = vmatprep.subr.mxu0 0.0
    %307 = vmatpush1.xpose.msra.mxu0 0.0
    %308 = vmatprep.subr.mxu0 0.0
    %309 = vmatpush1.xpose.msra.mxu0 0.0
    %310 = vmatprep.subr.mxu0 0.0
    %311 = vmatpush1.xpose.msra.mxu0 0.0
    %312 = vmatprep.subr.mxu0 0.0
    %313 = vmatpush1.xpose.msra.mxu0 0.0
    %314 = vmatprep.subr.mxu0 0.0
    %315 = vmatpush1.xpose.msra.mxu0 0.0
    %316 = vmatprep.subr.mxu0 0.0
    %317 = vmatpush1.xpose.msra.mxu0 0.0
    %318 = vmatprep.subr.mxu0 0.0
    %319 = vmatpush1.xpose.msra.mxu0 0.0
    %320 = vmatprep.subr.mxu0 0.0
    %321 = vmatpush1.xpose.msra.mxu0 0.0
    %322 = vmatprep.subr.mxu0 0.0
    %323 = vmatpush1.xpose.msra.mxu0 0.0
    %324 = vmatprep.subr.mxu0 0.0
    %325 = vmatpush1.xpose.msra.mxu0 0.0
    %326 = vmatprep.subr.mxu0 0.0
    %327 = vmatpush1.xpose.msra.mxu0 0.0
    %328 = vmatprep.subr.mxu0 0.0
    %329 = vmatpush1.xpose.msra.mxu0 0.0
    %330 = vmatprep.subr.mxu0 0.0
    %331 = vmatpush1.xpose.msra.mxu0 0.0
    %332 = vmatprep.subr.mxu0 0.0
    %333 = vmatpush1.xpose.msra.mxu0 0.0
    %334 = vmatprep.subr.mxu0 0.0
    %335 = vmatpush1.xpose.msra.mxu0 0.0
    %336 = vmatprep.mubr.f32.mxu0 0.0
    %337 = vmatmul.mubr.f32.gmra.mrb[0].mxu0 %v213
    %v338 = vpop.f32.mrb[0].mxu0
    %v339 = vadd.f32 %v193, %v338
    %v340 = vpop.f32.mrb[0].mxu0
    %341 = vmatprep.mubr.f32.mxu0 0.0
    %342 = vmatmul.mubr.f32.gmra.mrb[0].mxu0 %v216
    %v343 = vpop.f32.mrb[0].mxu0
    %v344 = vadd.f32 %v198, %v343
    %v345 = vpop.f32.mrb[0].mxu0
    %346 = vmatprep.mubr.f32.mxu0 0.0
    %347 = vmatmul.mubr.f32.gmra.mrb[0].mxu0 %v219
    %v348 = vpop.f32.mrb[0].mxu0
    %v349 = vadd.f32 %v203, %v348
    %v350 = vpop.f32.mrb[0].mxu0
    %351 = vmatprep.mubr.f32.mxu0 0.0
    %352 = vmatmul.mubr.f32.gmra.mrb[0].mxu0 %v222
    %v353 = vpop.f32.mrb[0].mxu0
    %v354 = vadd.f32 %v208, %v353
    %v355 = vpop.f32.mrb[0].mxu0
    %356 = vdwg.mxu0
    %v357 = vld [vmem:[%s4] sm:$0xff]
    %v358 = vld [vmem:[%s4 + $0x8] sm:$0xff]
    %v359 = vld [vmem:[%s4 + $0x10] sm:$0xff]
    %v360 = vld [vmem:[%s4 + $0x18] sm:$0x3f]
    %362 = vset.pattern.permute.xlu0 0
    %363 = vperm.xlu0 %362, %v357
    %v364 = vpop.permute.xlu0 %363
    %367 = vset.pattern.permute.xlu0 0
    %368 = vperm.xlu0 %367, %v358
    %v369 = vpop.permute.xlu0 %368
    %372 = vset.pattern.permute.xlu0 0
    %373 = vperm.xlu0 %372, %v359
    %v374 = vpop.permute.xlu0 %373
    %377 = vset.pattern.permute.xlu0 0
    %378 = vperm.xlu0 %377, %v360
    %v379 = vpop.permute.xlu0 %378
    %v381 = vadd.f32 %v339, %v364
    %v382 = vadd.f32 %v344, %v369
    %v383 = vadd.f32 %v349, %v374
    %v384 = vadd.f32 %v354, %v379
    %v385 = vmax.f32 %v381, 0.0
    %v386 = vmax.f32 %v382, 0.0
    %v387 = vmax.f32 %v383, 0.0
    %v388 = vmax.f32 %v384, 0.0
    %389 = vset.pattern.permute.xlu0 1
    %390 = vperm.xlu0 %389, %v357
    %v391 = vpop.permute.xlu0 %390
    %393 = vset.pattern.permute.xlu0 1
    %394 = vperm.xlu0 %393, %v358
    %v395 = vpop.permute.xlu0 %394
    %397 = vset.pattern.permute.xlu0 1
    %398 = vperm.xlu0 %397, %v359
    %v399 = vpop.permute.xlu0 %398
    %401 = vset.pattern.permute.xlu0 1
    %402 = vperm.xlu0 %401, %v360
    %v403 = vpop.permute.xlu0 %402
    %v405 = vmul.f32 %v385, %v391
    %v406 = vmul.f32 %v386, %v395
    %v407 = vmul.f32 %v387, %v399
    %v408 = vmul.f32 %v388, %v403
    %v409 = vadd.f32 %v405, %v406
    %v410 = vadd.f32 %v409, %v407
    %vm411 = vcmask 1045504
    %v412 = vsel %vm411, %v408, 0.0
    %v413 = vadd.f32 %v410, %v412
    %v414 = vrot.slane %v413, 4
    %v415 = vadd.f32 %v413, %v414
    %v416 = vrot.slane %v415, 2
    %v417 = vadd.f32 %v415, %v416
    %v418 = vrot.slane %v417, 1
    %v419 = vadd.f32 %v417, %v418
    %s420 = sld [smem:[#allocation2]]
    %v421 = vstv %s420
    %v422 = vadd.f32 %v419, %v421
    %423 = vst [vmem:[#allocation3] sm:$0x1] %v422
    // Predicated region
    $region26: #{tpu_custom_call.1} parent=1 // pred_check
      _
    $region27: #{tpu_custom_call.1} parent=1 // pred_check_branch
      %425 = sbr.rel (0) target = $region29
    $region28: #{tpu_custom_call.1} parent=1 // pred_region
      %s427 = ssub.s32 16, 16
      %428 = vsyncadd [#allocation4], %s427
      %s430 = sshll.u32 [#allocation3], 4
      %s431 = int_to_ptr.vmem [resolvable:$true] %s430
      %433 = dma.vmem_to_hbm [thread:$0]  %s431, 16, %s6, [#allocation4]
    $region29: #{tpu_custom_call.1} parent=1 // pred_fallthru
      _
    // Predicated region
    $region30: #{tpu_custom_call.1} parent=1 // pred_check
      _
    $region31: #{tpu_custom_call.1} parent=1 // pred_check_branch
      %435 = sbr.rel (0) target = $region33
    $region32: #{tpu_custom_call.1} parent=1 // pred_region
      %436 = dma.done [#allocation4], 16
    $region33: #{tpu_custom_call.1} parent=1 // pred_fallthru
      _
    %437 = vsyncpa [#allocation4], 1

</llo_original>
